<compile_context>
chip_gen: v7x
topology: tpu7x:2x2x1
jax: 0.10.0
libtpu: 0.0.40
codegen_flags: <defaults>
</compile_context>

<pallas_src>
import jax
import jax.numpy as jnp
from jax.experimental import pallas as pl
from jax.experimental.pallas import tpu as pltpu

LN_EPS = 1e-5  # PyTorch nn.LayerNorm default

_LANE = 128
_SUBLANE = 8
_MAX_BATCH_TILE = 512


def _round_up(x, m):
    return (x + m - 1) // m * m


def _layer_norm_fused(h, gamma, beta):
    # Single-pass statistics: var = E[h^2] - E[h]^2 (biased, matches PyTorch).
    mu = jnp.mean(h, axis=-1, keepdims=True)
    ms = jnp.mean(h * h, axis=-1, keepdims=True)
    var = ms - mu * mu
    return (h - mu) * jax.lax.rsqrt(var + LN_EPS) * gamma + beta


def expanding_mlp_kernel(
    x_ref,
    w1_ref, b1_ref,
    w2_ref, b2_ref, g2_ref, be2_ref,
    w3_ref, b3_ref, g3_ref, be3_ref,
    w4_ref, b4_ref,
    o_ref,
):
    x = x_ref[...]

    # Layer 1: Linear(in_dim -> H) + ReLU
    h = jnp.dot(x, w1_ref[...], preferred_element_type=jnp.float32) + b1_ref[...]
    h = jnp.maximum(h, 0.0)

    # Layer 2: Linear(H -> 2H) + ReLU + LayerNorm(2H)
    h = jnp.dot(h, w2_ref[...], preferred_element_type=jnp.float32) + b2_ref[...]
    h = jnp.maximum(h, 0.0)
    h = _layer_norm_fused(h, g2_ref[...], be2_ref[...])

    # Layer 3: Linear(2H -> 4H) + ReLU + LayerNorm(4H)
    h = jnp.dot(h, w3_ref[...], preferred_element_type=jnp.float32) + b3_ref[...]
    h = jnp.maximum(h, 0.0)
    h = _layer_norm_fused(h, g3_ref[...], be3_ref[...])

    # Output layer: Linear(4H -> out_dim_padded)  (lane-dense store)
    out = jnp.dot(h, w4_ref[...], preferred_element_type=jnp.float32) + b4_ref[...]
    o_ref[...] = out.astype(o_ref.dtype)


@jax.jit
def expanding_mlp_head(x, params):
    (w1, b1, w2, b2, g2, be2, w3, b3, g3, be3, w4, b4) = params
    B, in_dim = x.shape
    H = w1.shape[1]
    out_dim = w4.shape[1]

    # Lane-dense output: pad the final fan-out up to a multiple of 128 so the
    # output store is an unmasked full-lane vst; slice back in the wrapper.
    out_pad = _round_up(out_dim, _LANE)
    if out_pad != out_dim:
        w4 = jnp.pad(w4, ((0, 0), (0, out_pad - out_dim)))
        b4 = jnp.pad(b4, ((0, 0), (0, out_pad - out_dim)))

    # Batch tiling: large tiles (multiple of 8 sublanes) for DMA/compute
    # overlap; pad B so the grid divides evenly (padded rows are zeros and are
    # sliced off — LayerNorm on a zero row is finite thanks to eps).
    tb = min(_MAX_BATCH_TILE, _round_up(B, _SUBLANE))
    b_padded = _round_up(B, tb)
    if b_padded != B:
        x = jnp.pad(x, ((0, b_padded - B), (0, 0)))
    grid = (b_padded // tb,)

    padded_params = (w1, b1, w2, b2, g2, be2, w3, b3, g3, be3, w4, b4)

    def resident_spec(p):
        # Full-array block mapped to the same block index every grid step ->
        # parameter stays resident in VMEM across the batch loop.
        return pl.BlockSpec(p.shape, lambda i: (0,) * p.ndim)

    x_spec = pl.BlockSpec((tb, in_dim), lambda i: (i, 0))
    out_spec = pl.BlockSpec((tb, out_pad), lambda i: (i, 0))
    param_specs = [resident_spec(p) for p in padded_params]

    # Cost hint for XLA's scheduler around the custom call.
    flops = 2 * b_padded * (in_dim * H + H * 2 * H + 2 * H * 4 * H + 4 * H * out_pad)
    param_bytes = sum(int(p.size) * p.dtype.itemsize for p in padded_params)
    bytes_accessed = (b_padded * in_dim + b_padded * out_pad) * 4 + param_bytes
    cost = pl.CostEstimate(
        flops=flops, transcendentals=2 * b_padded, bytes_accessed=bytes_accessed
    )

    # VMEM budget: resident params + double-buffered x/out tiles + f32
    # intermediates, with generous headroom; clamped to be safe on v7x (64 MiB
    # physical) while still lifting v5e's 16 MiB default when needed.
    act_bytes = tb * (H + 2 * H + 4 * H + out_pad) * 4
    io_bytes = 2 * tb * (in_dim + out_pad) * 4
    vmem_limit = int(
        min(max(4 * (param_bytes + act_bytes + io_bytes), 16 << 20), 48 << 20)
    )

    out = pl.pallas_call(
        expanding_mlp_kernel,
        out_shape=jax.ShapeDtypeStruct((b_padded, out_pad), jnp.float32),
        grid=grid,
        in_specs=[x_spec] + param_specs,
        out_specs=out_spec,
        compiler_params=pltpu.CompilerParams(
            dimension_semantics=("parallel",),
            vmem_limit_bytes=vmem_limit,
        ),
        cost_estimate=cost,
    )(x, *padded_params)

    return out[:B, :out_dim]


def init_params(key, in_dim, out_dim, hidden_dim):
    """Deterministic synthetic init (shapes match nn.Linear/nn.LayerNorm)."""
    dims = [in_dim, hidden_dim, hidden_dim * 2, hidden_dim * 4, out_dim]
    keys = jax.random.split(key, 8)

    def lin(kw, kb, fan_in, fan_out):
        bound = 1.0 / jnp.sqrt(fan_in)
        w = jax.random.uniform(kw, (fan_in, fan_out), jnp.float32, -bound, bound)
        b = jax.random.uniform(kb, (1, fan_out), jnp.float32, -bound, bound)
        return w, b

    w1, b1 = lin(keys[0], keys[1], dims[0], dims[1])
    w2, b2 = lin(keys[2], keys[3], dims[1], dims[2])
    w3, b3 = lin(keys[4], keys[5], dims[2], dims[3])
    w4, b4 = lin(keys[6], keys[7], dims[3], dims[4])
    g2 = jnp.ones((1, dims[2]), jnp.float32)
    be2 = jnp.zeros((1, dims[2]), jnp.float32)
    g3 = jnp.ones((1, dims[3]), jnp.float32)
    be3 = jnp.zeros((1, dims[3]), jnp.float32)
    return (w1, b1, w2, b2, g2, be2, w3, b3, g3, be3, w4, b4)


def reference_forward(x, params):
    """Pure-JAX reference (classic two-pass LayerNorm, matches nn.LayerNorm)."""
    (w1, b1, w2, b2, g2, be2, w3, b3, g3, be3, w4, b4) = params

    def ln(h, gamma, beta):
        mu = jnp.mean(h, axis=-1, keepdims=True)
        var = jnp.mean((h - mu) ** 2, axis=-1, keepdims=True)
        return (h - mu) * jax.lax.rsqrt(var + LN_EPS) * gamma + beta

    h = jnp.maximum(x @ w1 + b1, 0.0)
    h = jnp.maximum(h @ w2 + b2, 0.0)
    h = ln(h, g2, be2)
    h = jnp.maximum(h @ w3 + b3, 0.0)
    h = ln(h, g3, be3)
    return h @ w4 + b4


if __name__ == "__main__":
    in_dim, out_dim, hidden_dim = 32, 16, 32

    key = jax.random.PRNGKey(0)
    kx, kp = jax.random.split(key)
    params = init_params(kp, in_dim, out_dim, hidden_dim)

    # Small, tile-aligned batch.
    x_small = jax.random.normal(kx, (8, in_dim), jnp.float32)
    out_small = jax.block_until_ready(expanding_mlp_head(x_small, params))
    ref_small = reference_forward(x_small, params)
    assert out_small.shape == (8, out_dim)
    assert jnp.allclose(out_small, ref_small, atol=1e-4, rtol=1e-4), "mismatch (B=8)"

    # Batch not divisible by the sublane/tile size -> exercises the padding path.
    x_odd = jax.random.normal(kx, (50, in_dim), jnp.float32)
    out_odd = jax.block_until_ready(expanding_mlp_head(x_odd, params))
    ref_odd = reference_forward(x_odd, params)
    assert out_odd.shape == (50, out_dim)
    assert jnp.allclose(out_odd, ref_odd, atol=1e-4, rtol=1e-4), "mismatch (B=50)"

    print("KERNEL_OK")
</pallas_src>

<mosaic_0001>
module attributes {stable_mosaic.version = 11 : i64} {
  func.func @expanding_mlp_kernel(%arg0: i32, %arg1: memref<8x32xf32, #tpu.memory_space<vmem>>, %arg2: memref<32x32xf32, #tpu.memory_space<vmem>>, %arg3: memref<1x32xf32, #tpu.memory_space<vmem>>, %arg4: memref<32x64xf32, #tpu.memory_space<vmem>>, %arg5: memref<1x64xf32, #tpu.memory_space<vmem>>, %arg6: memref<1x64xf32, #tpu.memory_space<vmem>>, %arg7: memref<1x64xf32, #tpu.memory_space<vmem>>, %arg8: memref<64x128xf32, #tpu.memory_space<vmem>>, %arg9: memref<1x128xf32, #tpu.memory_space<vmem>>, %arg10: memref<1x128xf32, #tpu.memory_space<vmem>>, %arg11: memref<1x128xf32, #tpu.memory_space<vmem>>, %arg12: memref<128x128xf32, #tpu.memory_space<vmem>>, %arg13: memref<1x128xf32, #tpu.memory_space<vmem>>, %arg14: memref<8x128xf32, #tpu.memory_space<vmem>>) attributes {dimension_semantics = [#tpu.dimension_semantics<parallel>], iteration_bounds = array<i64: 1>, scalar_prefetch = 0 : i64, scratch_operands = 0 : i64, tpu.core_type = #tpu.core_type<tc>, window_params = [{transform_indices = @transform_0, window_bounds = array<i64: 8, 32>}, {pipeline_mode = #tpu.pipeline_mode<synchronous>, transform_indices = @transform_1, window_bounds = array<i64: 32, 32>}, {pipeline_mode = #tpu.pipeline_mode<synchronous>, transform_indices = @transform_2, window_bounds = array<i64: 1, 32>}, {pipeline_mode = #tpu.pipeline_mode<synchronous>, transform_indices = @transform_3, window_bounds = array<i64: 32, 64>}, {pipeline_mode = #tpu.pipeline_mode<synchronous>, transform_indices = @transform_4, window_bounds = array<i64: 1, 64>}, {pipeline_mode = #tpu.pipeline_mode<synchronous>, transform_indices = @transform_5, window_bounds = array<i64: 1, 64>}, {pipeline_mode = #tpu.pipeline_mode<synchronous>, transform_indices = @transform_6, window_bounds = array<i64: 1, 64>}, {pipeline_mode = #tpu.pipeline_mode<synchronous>, transform_indices = @transform_7, window_bounds = array<i64: 64, 128>}, {pipeline_mode = #tpu.pipeline_mode<synchronous>, transform_indices = @transform_8, window_bounds = array<i64: 1, 128>}, {pipeline_mode = #tpu.pipeline_mode<synchronous>, transform_indices = @transform_9, window_bounds = array<i64: 1, 128>}, {pipeline_mode = #tpu.pipeline_mode<synchronous>, transform_indices = @transform_10, window_bounds = array<i64: 1, 128>}, {pipeline_mode = #tpu.pipeline_mode<synchronous>, transform_indices = @transform_11, window_bounds = array<i64: 128, 128>}, {pipeline_mode = #tpu.pipeline_mode<synchronous>, transform_indices = @transform_12, window_bounds = array<i64: 1, 128>}, {transform_indices = @transform_13, window_bounds = array<i64: 8, 128>}]} {
    %c0 = arith.constant 0 : index
    %c0_0 = arith.constant 0 : index
    %0 = vector.load %arg1[%c0, %c0_0] : memref<8x32xf32, #tpu.memory_space<vmem>>, vector<8x32xf32>
    %c0_1 = arith.constant 0 : index
    %c0_2 = arith.constant 0 : index
    %1 = vector.load %arg2[%c0_1, %c0_2] : memref<32x32xf32, #tpu.memory_space<vmem>>, vector<32x32xf32>
    %cst = arith.constant dense<0.000000e+00> : vector<8x32xf32>
    %2 = tpu.matmul %0, %1, %cst {dimension_numbers = #tpu.dot_dimension_numbers<[1], [0], [0], [1], [0, 0, 1, 1], [], []>} : vector<8x32xf32>, vector<32x32xf32>, vector<8x32xf32> -> vector<8x32xf32>
    %c0_3 = arith.constant 0 : index
    %c0_4 = arith.constant 0 : index
    %3 = vector.load %arg3[%c0_3, %c0_4] : memref<1x32xf32, #tpu.memory_space<vmem>>, vector<1x32xf32>
    %4 = vector.broadcast %3 : vector<1x32xf32> to vector<8x32xf32>
    %5 = arith.addf %2, %4 : vector<8x32xf32>
    %cst_5 = arith.constant 0.000000e+00 : f32
    %6 = vector.broadcast %cst_5 : f32 to vector<8x32xf32>
    %7 = arith.maximumf %5, %6 : vector<8x32xf32>
    %c0_6 = arith.constant 0 : index
    %c0_7 = arith.constant 0 : index
    %8 = vector.load %arg4[%c0_6, %c0_7] : memref<32x64xf32, #tpu.memory_space<vmem>>, vector<32x64xf32>
    %cst_8 = arith.constant dense<0.000000e+00> : vector<8x64xf32>
    %9 = tpu.matmul %7, %8, %cst_8 {dimension_numbers = #tpu.dot_dimension_numbers<[1], [0], [0], [1], [0, 0, 1, 1], [], []>} : vector<8x32xf32>, vector<32x64xf32>, vector<8x64xf32> -> vector<8x64xf32>
    %c0_9 = arith.constant 0 : index
    %c0_10 = arith.constant 0 : index
    %10 = vector.load %arg5[%c0_9, %c0_10] : memref<1x64xf32, #tpu.memory_space<vmem>>, vector<1x64xf32>
    %11 = vector.broadcast %10 : vector<1x64xf32> to vector<8x64xf32>
    %12 = arith.addf %9, %11 : vector<8x64xf32>
    %cst_11 = arith.constant 0.000000e+00 : f32
    %13 = vector.broadcast %cst_11 : f32 to vector<8x64xf32>
    %14 = arith.maximumf %12, %13 : vector<8x64xf32>
    %c0_12 = arith.constant 0 : index
    %c0_13 = arith.constant 0 : index
    %15 = vector.load %arg6[%c0_12, %c0_13] : memref<1x64xf32, #tpu.memory_space<vmem>>, vector<1x64xf32>
    %c0_14 = arith.constant 0 : index
    %c0_15 = arith.constant 0 : index
    %16 = vector.load %arg7[%c0_14, %c0_15] : memref<1x64xf32, #tpu.memory_space<vmem>>, vector<1x64xf32>
    %cst_16 = arith.constant dense<0.000000e+00> : vector<8xf32>
    %17 = vector.multi_reduction <add>, %14, %cst_16 [1] : vector<8x64xf32> to vector<8xf32>
    %18 = vector.shape_cast %17 : vector<8xf32> to vector<8x1xf32>
    %cst_17 = arith.constant 6.400000e+01 : f32
    %19 = vector.broadcast %cst_17 : f32 to vector<8x1xf32>
    %20 = arith.divf %18, %19 : vector<8x1xf32>
    %21 = arith.mulf %14, %14 : vector<8x64xf32>
    %cst_18 = arith.constant dense<0.000000e+00> : vector<8xf32>
    %22 = vector.multi_reduction <add>, %21, %cst_18 [1] : vector<8x64xf32> to vector<8xf32>
    %23 = vector.shape_cast %22 : vector<8xf32> to vector<8x1xf32>
    %cst_19 = arith.constant 6.400000e+01 : f32
    %24 = vector.broadcast %cst_19 : f32 to vector<8x1xf32>
    %25 = arith.divf %23, %24 : vector<8x1xf32>
    %26 = arith.mulf %20, %20 : vector<8x1xf32>
    %27 = arith.subf %25, %26 : vector<8x1xf32>
    %28 = vector.broadcast %20 : vector<8x1xf32> to vector<8x64xf32>
    %29 = arith.subf %14, %28 : vector<8x64xf32>
    %cst_20 = arith.constant 9.99999974E-6 : f32
    %30 = vector.broadcast %cst_20 : f32 to vector<8x1xf32>
    %31 = arith.addf %27, %30 : vector<8x1xf32>
    %32 = math.rsqrt %31 : vector<8x1xf32>
    %33 = vector.broadcast %32 : vector<8x1xf32> to vector<8x64xf32>
    %34 = arith.mulf %29, %33 : vector<8x64xf32>
    %35 = vector.broadcast %15 : vector<1x64xf32> to vector<8x64xf32>
    %36 = arith.mulf %34, %35 : vector<8x64xf32>
    %37 = vector.broadcast %16 : vector<1x64xf32> to vector<8x64xf32>
    %38 = arith.addf %36, %37 : vector<8x64xf32>
    %c0_21 = arith.constant 0 : index
    %c0_22 = arith.constant 0 : index
    %39 = vector.load %arg8[%c0_21, %c0_22] : memref<64x128xf32, #tpu.memory_space<vmem>>, vector<64x128xf32>
    %cst_23 = arith.constant dense<0.000000e+00> : vector<8x128xf32>
    %40 = tpu.matmul %38, %39, %cst_23 {dimension_numbers = #tpu.dot_dimension_numbers<[1], [0], [0], [1], [0, 0, 1, 1], [], []>} : vector<8x64xf32>, vector<64x128xf32>, vector<8x128xf32> -> vector<8x128xf32>
    %c0_24 = arith.constant 0 : index
    %c0_25 = arith.constant 0 : index
    %41 = vector.load %arg9[%c0_24, %c0_25] : memref<1x128xf32, #tpu.memory_space<vmem>>, vector<1x128xf32>
    %42 = vector.broadcast %41 : vector<1x128xf32> to vector<8x128xf32>
    %43 = arith.addf %40, %42 : vector<8x128xf32>
    %cst_26 = arith.constant 0.000000e+00 : f32
    %44 = vector.broadcast %cst_26 : f32 to vector<8x128xf32>
    %45 = arith.maximumf %43, %44 : vector<8x128xf32>
    %c0_27 = arith.constant 0 : index
    %c0_28 = arith.constant 0 : index
    %46 = vector.load %arg10[%c0_27, %c0_28] : memref<1x128xf32, #tpu.memory_space<vmem>>, vector<1x128xf32>
    %c0_29 = arith.constant 0 : index
    %c0_30 = arith.constant 0 : index
    %47 = vector.load %arg11[%c0_29, %c0_30] : memref<1x128xf32, #tpu.memory_space<vmem>>, vector<1x128xf32>
    %cst_31 = arith.constant dense<0.000000e+00> : vector<8xf32>
    %48 = vector.multi_reduction <add>, %45, %cst_31 [1] : vector<8x128xf32> to vector<8xf32>
    %49 = vector.shape_cast %48 : vector<8xf32> to vector<8x1xf32>
    %cst_32 = arith.constant 1.280000e+02 : f32
    %50 = vector.broadcast %cst_32 : f32 to vector<8x1xf32>
    %51 = arith.divf %49, %50 : vector<8x1xf32>
    %52 = arith.mulf %45, %45 : vector<8x128xf32>
    %cst_33 = arith.constant dense<0.000000e+00> : vector<8xf32>
    %53 = vector.multi_reduction <add>, %52, %cst_33 [1] : vector<8x128xf32> to vector<8xf32>
    %54 = vector.shape_cast %53 : vector<8xf32> to vector<8x1xf32>
    %cst_34 = arith.constant 1.280000e+02 : f32
    %55 = vector.broadcast %cst_34 : f32 to vector<8x1xf32>
    %56 = arith.divf %54, %55 : vector<8x1xf32>
    %57 = arith.mulf %51, %51 : vector<8x1xf32>
    %58 = arith.subf %56, %57 : vector<8x1xf32>
    %59 = vector.broadcast %51 : vector<8x1xf32> to vector<8x128xf32>
    %60 = arith.subf %45, %59 : vector<8x128xf32>
    %cst_35 = arith.constant 9.99999974E-6 : f32
    %61 = vector.broadcast %cst_35 : f32 to vector<8x1xf32>
    %62 = arith.addf %58, %61 : vector<8x1xf32>
    %63 = math.rsqrt %62 : vector<8x1xf32>
    %64 = vector.broadcast %63 : vector<8x1xf32> to vector<8x128xf32>
    %65 = arith.mulf %60, %64 : vector<8x128xf32>
    %66 = vector.broadcast %46 : vector<1x128xf32> to vector<8x128xf32>
    %67 = arith.mulf %65, %66 : vector<8x128xf32>
    %68 = vector.broadcast %47 : vector<1x128xf32> to vector<8x128xf32>
    %69 = arith.addf %67, %68 : vector<8x128xf32>
    %c0_36 = arith.constant 0 : index
    %c0_37 = arith.constant 0 : index
    %70 = vector.load %arg12[%c0_36, %c0_37] : memref<128x128xf32, #tpu.memory_space<vmem>>, vector<128x128xf32>
    %cst_38 = arith.constant dense<0.000000e+00> : vector<8x128xf32>
    %71 = tpu.matmul %69, %70, %cst_38 {dimension_numbers = #tpu.dot_dimension_numbers<[1], [0], [0], [1], [0, 0, 1, 1], [], []>} : vector<8x128xf32>, vector<128x128xf32>, vector<8x128xf32> -> vector<8x128xf32>
    %c0_39 = arith.constant 0 : index
    %c0_40 = arith.constant 0 : index
    %72 = vector.load %arg13[%c0_39, %c0_40] : memref<1x128xf32, #tpu.memory_space<vmem>>, vector<1x128xf32>
    %73 = vector.broadcast %72 : vector<1x128xf32> to vector<8x128xf32>
    %74 = arith.addf %71, %73 : vector<8x128xf32>
    %c0_41 = arith.constant 0 : index
    %c0_42 = arith.constant 0 : index
    %75 = vector.load %arg14[%c0_41, %c0_42] : memref<8x128xf32, #tpu.memory_space<vmem>>, vector<8x128xf32>
    tpu.vector_store %arg14[%c0_41, %c0_42], %74 {strides = array<i32>} : memref<8x128xf32, #tpu.memory_space<vmem>>, vector<8x128xf32>,
    return
  }
  func.func @transform_0(%arg0: i32) -> (i32, i32) {
    %c0_i32 = arith.constant 0 : i32
    %c0_i32_0 = arith.constant 0 : i32
    return %arg0, %c0_i32 : i32, i32
  }
  func.func @transform_1(%arg0: i32) -> (i32, i32) {
    %c0_i32 = arith.constant 0 : i32
    %c0_i32_0 = arith.constant 0 : i32
    %c0_i32_1 = arith.constant 0 : i32
    return %c0_i32, %c0_i32_0 : i32, i32
  }
  func.func @transform_2(%arg0: i32) -> (i32, i32) {
    %c0_i32 = arith.constant 0 : i32
    %c0_i32_0 = arith.constant 0 : i32
    %c0_i32_1 = arith.constant 0 : i32
    return %c0_i32, %c0_i32_0 : i32, i32
  }
  func.func @transform_3(%arg0: i32) -> (i32, i32) {
    %c0_i32 = arith.constant 0 : i32
    %c0_i32_0 = arith.constant 0 : i32
    %c0_i32_1 = arith.constant 0 : i32
    return %c0_i32, %c0_i32_0 : i32, i32
  }
  func.func @transform_4(%arg0: i32) -> (i32, i32) {
    %c0_i32 = arith.constant 0 : i32
    %c0_i32_0 = arith.constant 0 : i32
    %c0_i32_1 = arith.constant 0 : i32
    return %c0_i32, %c0_i32_0 : i32, i32
  }
  func.func @transform_5(%arg0: i32) -> (i32, i32) {
    %c0_i32 = arith.constant 0 : i32
    %c0_i32_0 = arith.constant 0 : i32
    %c0_i32_1 = arith.constant 0 : i32
    return %c0_i32, %c0_i32_0 : i32, i32
  }
  func.func @transform_6(%arg0: i32) -> (i32, i32) {
    %c0_i32 = arith.constant 0 : i32
    %c0_i32_0 = arith.constant 0 : i32
    %c0_i32_1 = arith.constant 0 : i32
    return %c0_i32, %c0_i32_0 : i32, i32
  }
  func.func @transform_7(%arg0: i32) -> (i32, i32) {
    %c0_i32 = arith.constant 0 : i32
    %c0_i32_0 = arith.constant 0 : i32
    %c0_i32_1 = arith.constant 0 : i32
    return %c0_i32, %c0_i32_0 : i32, i32
  }
  func.func @transform_8(%arg0: i32) -> (i32, i32) {
    %c0_i32 = arith.constant 0 : i32
    %c0_i32_0 = arith.constant 0 : i32
    %c0_i32_1 = arith.constant 0 : i32
    return %c0_i32, %c0_i32_0 : i32, i32
  }
  func.func @transform_9(%arg0: i32) -> (i32, i32) {
    %c0_i32 = arith.constant 0 : i32
    %c0_i32_0 = arith.constant 0 : i32
    %c0_i32_1 = arith.constant 0 : i32
    return %c0_i32, %c0_i32_0 : i32, i32
  }
  func.func @transform_10(%arg0: i32) -> (i32, i32) {
    %c0_i32 = arith.constant 0 : i32
    %c0_i32_0 = arith.constant 0 : i32
    %c0_i32_1 = arith.constant 0 : i32
    return %c0_i32, %c0_i32_0 : i32, i32
  }
  func.func @transform_11(%arg0: i32) -> (i32, i32) {
    %c0_i32 = arith.constant 0 : i32
    %c0_i32_0 = arith.constant 0 : i32
    %c0_i32_1 = arith.constant 0 : i32
    return %c0_i32, %c0_i32_0 : i32, i32
  }
  func.func @transform_12(%arg0: i32) -> (i32, i32) {
    %c0_i32 = arith.constant 0 : i32
    %c0_i32_0 = arith.constant 0 : i32
    %c0_i32_1 = arith.constant 0 : i32
    return %c0_i32, %c0_i32_0 : i32, i32
  }
  func.func @transform_13(%arg0: i32) -> (i32, i32) {
    %c0_i32 = arith.constant 0 : i32
    %c0_i32_0 = arith.constant 0 : i32
    return %arg0, %c0_i32 : i32, i32
  }
}

</mosaic_0001>

<llo_original>
// kernel: expanding_mlp_head.1
$region0: #{expanding_mlp_head.1}
  #allocation0 [shape = 'u32[]', space=smem, size = 0x4, offset = 0x4, fixed_abs, tag = 'smem constant byte address 0x4 - core index']
  #allocation1 [shape = 'u32[144,128]{1,0:T(1,128)}', space=vmem, size = 0x12000, scoped, tag = 'internal scratch']
  %s0 = inlined_call_operand.vmem [shape: f32[8,32], index: 0, kind: input, shape index: {}]
  %s1 = inlined_call_operand.vmem [shape: f32[32,32], index: 1, kind: input, shape index: {}]
  %s2 = inlined_call_operand.vmem [shape: f32[1,32], index: 2, kind: input, shape index: {}]
  %s3 = inlined_call_operand.vmem [shape: f32[32,64], index: 3, kind: input, shape index: {}]
  %s4 = inlined_call_operand.vmem [shape: f32[1,64], index: 4, kind: input, shape index: {}]
  %s5 = inlined_call_operand.vmem [shape: f32[1,64], index: 5, kind: input, shape index: {}]
  %s6 = inlined_call_operand.vmem [shape: f32[1,64], index: 6, kind: input, shape index: {}]
  %s7 = inlined_call_operand.vmem [shape: f32[64,128], index: 7, kind: input, shape index: {}]
  %s8 = inlined_call_operand.vmem [shape: f32[1,128], index: 8, kind: input, shape index: {}]
  %s9 = inlined_call_operand.vmem [shape: f32[1,128], index: 9, kind: input, shape index: {}]
  %s10 = inlined_call_operand.vmem [shape: f32[1,128], index: 10, kind: input, shape index: {}]
  %s11 = inlined_call_operand.vmem [shape: f32[128,128], index: 11, kind: input, shape index: {}]
  %s12 = inlined_call_operand.vmem [shape: f32[1,128], index: 12, kind: input, shape index: {}]
  %s13 = inlined_call_operand.hbm [shape: f32[8,128], index: 13, kind: output, shape index: {}]
  %s14 = sld [smem:[#allocation0]]
  $region62: #{expanding_mlp_head.1} parent=0
    _
  %s16 = ssub.s32 1, %s14
  %s17 = scalar_select 0, %s16, %s14
  $region1: #{expanding_mlp_head.1} parent=0
    #allocation2 [shape = 'u8[4096]{0}', space=vmem, size = 0x1000, scoped, tag = 'output window, operand 0, single buffered']
    #allocation3 [shape = 's32[1]{0}', space=sflag, size = 0x4, scoped, tag = 'scoped memory for expanding_mlp_head.1']
    %18 = vsyncpa [#allocation3], 0
    // Predicated region
    $region2: #{expanding_mlp_head.1} parent=1 // pred_check
      _
    $region3: #{expanding_mlp_head.1} parent=1 // pred_check_branch
      %20 = sbr.rel (0) target = $region5
    $region4: #{expanding_mlp_head.1} parent=1 // pred_region
      _
    $region5: #{expanding_mlp_head.1} parent=1 // pred_fallthru
      _
    // Predicated region
    $region6: #{expanding_mlp_head.1} parent=1 // pred_check
      _
    $region7: #{expanding_mlp_head.1} parent=1 // pred_check_branch
      %22 = sbr.rel (0) target = $region9
    $region8: #{expanding_mlp_head.1} parent=1 // pred_region
      _
    $region9: #{expanding_mlp_head.1} parent=1 // pred_fallthru
      _
    // Predicated region
    $region10: #{expanding_mlp_head.1} parent=1 // pred_check
      _
    $region11: #{expanding_mlp_head.1} parent=1 // pred_check_branch
      %24 = sbr.rel (0) target = $region13
    $region12: #{expanding_mlp_head.1} parent=1 // pred_region
      _
    $region13: #{expanding_mlp_head.1} parent=1 // pred_fallthru
      _
    // Predicated region
    $region14: #{expanding_mlp_head.1} parent=1 // pred_check
      _
    $region15: #{expanding_mlp_head.1} parent=1 // pred_check_branch
      %26 = sbr.rel (0) target = $region17
    $region16: #{expanding_mlp_head.1} parent=1 // pred_region
      _
    $region17: #{expanding_mlp_head.1} parent=1 // pred_fallthru
      _
    // Predicated region
    $region18: #{expanding_mlp_head.1} parent=1 // pred_check
      _
    $region19: #{expanding_mlp_head.1} parent=1 // pred_check_branch
      %28 = sbr.rel (0) target = $region21
    $region20: #{expanding_mlp_head.1} parent=1 // pred_region
      _
    $region21: #{expanding_mlp_head.1} parent=1 // pred_fallthru
      _
    // Predicated region
    $region22: #{expanding_mlp_head.1} parent=1 // pred_check
      _
    $region23: #{expanding_mlp_head.1} parent=1 // pred_check_branch
      %30 = sbr.rel (0) target = $region25
    $region24: #{expanding_mlp_head.1} parent=1 // pred_region
      _
    $region25: #{expanding_mlp_head.1} parent=1 // pred_fallthru
      _
    // Predicated region
    $region26: #{expanding_mlp_head.1} parent=1 // pred_check
      _
    $region27: #{expanding_mlp_head.1} parent=1 // pred_check_branch
      %32 = sbr.rel (0) target = $region29
    $region28: #{expanding_mlp_head.1} parent=1 // pred_region
      _
    $region29: #{expanding_mlp_head.1} parent=1 // pred_fallthru
      _
    // Predicated region
    $region30: #{expanding_mlp_head.1} parent=1 // pred_check
      _
    $region31: #{expanding_mlp_head.1} parent=1 // pred_check_branch
      %34 = sbr.rel (0) target = $region33
    $region32: #{expanding_mlp_head.1} parent=1 // pred_region
      _
    $region33: #{expanding_mlp_head.1} parent=1 // pred_fallthru
      _
    // Predicated region
    $region34: #{expanding_mlp_head.1} parent=1 // pred_check
      _
    $region35: #{expanding_mlp_head.1} parent=1 // pred_check_branch
      %36 = sbr.rel (0) target = $region37
    $region36: #{expanding_mlp_head.1} parent=1 // pred_region
      _
    $region37: #{expanding_mlp_head.1} parent=1 // pred_fallthru
      _
    // Predicated region
    $region38: #{expanding_mlp_head.1} parent=1 // pred_check
      _
    $region39: #{expanding_mlp_head.1} parent=1 // pred_check_branch
      %38 = sbr.rel (0) target = $region41
    $region40: #{expanding_mlp_head.1} parent=1 // pred_region
      _
    $region41: #{expanding_mlp_head.1} parent=1 // pred_fallthru
      _
    // Predicated region
    $region42: #{expanding_mlp_head.1} parent=1 // pred_check
      _
    $region43: #{expanding_mlp_head.1} parent=1 // pred_check_branch
      %40 = sbr.rel (0) target = $region45
    $region44: #{expanding_mlp_head.1} parent=1 // pred_region
      _
    $region45: #{expanding_mlp_head.1} parent=1 // pred_fallthru
      _
    // Predicated region
    $region46: #{expanding_mlp_head.1} parent=1 // pred_check
      _
    $region47: #{expanding_mlp_head.1} parent=1 // pred_check_branch
      %42 = sbr.rel (0) target = $region49
    $region48: #{expanding_mlp_head.1} parent=1 // pred_region
      _
    $region49: #{expanding_mlp_head.1} parent=1 // pred_fallthru
      _
    // Predicated region
    $region50: #{expanding_mlp_head.1} parent=1 // pred_check
      _
    $region51: #{expanding_mlp_head.1} parent=1 // pred_check_branch
      %44 = sbr.rel (0) target = $region53
    $region52: #{expanding_mlp_head.1} parent=1 // pred_region
      _
    $region53: #{expanding_mlp_head.1} parent=1 // pred_fallthru
      _
    %v45 = vld [vmem:[%s0] sm:$0xff]
    %v46 = vld [vmem:[%s1] sm:$0xff]
    %v47 = vld [vmem:[%s1 + $0x8] sm:$0xff]
    %v48 = vld [vmem:[%s1 + $0x10] sm:$0xff]
    %v49 = vld [vmem:[%s1 + $0x18] sm:$0xff]
    %v50 = vld [vmem:[%s2] sm:$0x1]
    %v52 = vlaneseq
    %v53 = vshrl.u32 %v52, 7
    %v54 = vsub.s32 0, %v53
    %v55 = vrot.slane %v50, %v54
    %vm57 = vcmask 261120
    %v59 = vsel %vm57, %v45, 0
    %61 = vmatprep.subr.mxu0 0.0
    %62 = vmatpush1.msra.mxu0 %v46
    %63 = vmatprep.subr.mxu0 0.0
    %64 = vmatpush1.msra.mxu0 %v47
    %65 = vmatprep.subr.mxu0 0.0
    %66 = vmatpush1.msra.mxu0 %v48
    %67 = vmatprep.subr.mxu0 0.0
    %68 = vmatpush1.msra.mxu0 %v49
    %69 = vmatprep.subr.mxu0 0.0
    %70 = vmatpush1.msra.mxu0 0.0
    %71 = vmatprep.subr.mxu0 0.0
    %72 = vmatpush1.msra.mxu0 0.0
    %73 = vmatprep.subr.mxu0 0.0
    %74 = vmatpush1.msra.mxu0 0.0
    %75 = vmatprep.subr.mxu0 0.0
    %76 = vmatpush1.msra.mxu0 0.0
    %77 = vmatprep.subr.mxu0 0.0
    %78 = vmatpush1.msra.mxu0 0.0
    %79 = vmatprep.subr.mxu0 0.0
    %80 = vmatpush1.msra.mxu0 0.0
    %81 = vmatprep.subr.mxu0 0.0
    %82 = vmatpush1.msra.mxu0 0.0
    %83 = vmatprep.subr.mxu0 0.0
    %84 = vmatpush1.msra.mxu0 0.0
    %85 = vmatprep.subr.mxu0 0.0
    %86 = vmatpush1.msra.mxu0 0.0
    %87 = vmatprep.subr.mxu0 0.0
    %88 = vmatpush1.msra.mxu0 0.0
    %89 = vmatprep.subr.mxu0 0.0
    %90 = vmatpush1.msra.mxu0 0.0
    %91 = vmatprep.subr.mxu0 0.0
    %92 = vmatpush1.msra.mxu0 0.0
    %93 = vmatprep.subr.mxu0 0.0
    %94 = vmatpush1.msra.mxu0 0.0
    %95 = vmatprep.subr.mxu0 0.0
    %96 = vmatpush1.msra.mxu0 0.0
    %97 = vmatprep.subr.mxu0 0.0
    %98 = vmatpush1.msra.mxu0 0.0
    %99 = vmatprep.subr.mxu0 0.0
    %100 = vmatpush1.msra.mxu0 0.0
    %101 = vmatprep.subr.mxu0 0.0
    %102 = vmatpush1.msra.mxu0 0.0
    %103 = vmatprep.subr.mxu0 0.0
    %104 = vmatpush1.msra.mxu0 0.0
    %105 = vmatprep.subr.mxu0 0.0
    %106 = vmatpush1.msra.mxu0 0.0
    %107 = vmatprep.subr.mxu0 0.0
    %108 = vmatpush1.msra.mxu0 0.0
    %109 = vmatprep.subr.mxu0 0.0
    %110 = vmatpush1.msra.mxu0 0.0
    %111 = vmatprep.subr.mxu0 0.0
    %112 = vmatpush1.msra.mxu0 0.0
    %113 = vmatprep.subr.mxu0 0.0
    %114 = vmatpush1.msra.mxu0 0.0
    %115 = vmatprep.subr.mxu0 0.0
    %116 = vmatpush1.msra.mxu0 0.0
    %117 = vmatprep.subr.mxu0 0.0
    %118 = vmatpush1.msra.mxu0 0.0
    %119 = vmatprep.subr.mxu0 0.0
    %120 = vmatpush1.msra.mxu0 0.0
    %121 = vmatprep.subr.mxu0 0.0
    %122 = vmatpush1.msra.mxu0 0.0
    %123 = vmatprep.subr.mxu0 0.0
    %124 = vmatpush1.msra.mxu0 0.0
    %125 = vmatprep.mubr.f32.mxu0 0.0
    %126 = vmatmul.mubr.f32.gmra.mrb[0].mxu0 %v59
    %v127 = vpop.f32.mrb[0].mxu0
    %v128 = vadd.f32 %v55, %v127
    %v129 = vpop.f32.mrb[0].mxu0
    %130 = vdwg.mxu0
    %v131 = vmax.f32 %v128, 0.0
    %v132 = vld [vmem:[%s3] sm:$0xff]
    %v133 = vld [vmem:[%s3 + $0x8] sm:$0xff]
    %v134 = vld [vmem:[%s3 + $0x10] sm:$0xff]
    %v135 = vld [vmem:[%s3 + $0x18] sm:$0xff]
    %v136 = vld [vmem:[%s4] sm:$0x1]
    %v138 = vlaneseq
    %v139 = vshrl.u32 %v138, 7
    %v140 = vsub.s32 0, %v139
    %v141 = vrot.slane %v136, %v140
    %v144 = vsel %vm57, %v131, 0
    %146 = vmatprep.subr.mxu0 0.0
    %147 = vmatpush1.msra.mxu0 %v132
    %148 = vmatprep.subr.mxu0 0.0
    %149 = vmatpush1.msra.mxu0 %v133
    %150 = vmatprep.subr.mxu0 0.0
    %151 = vmatpush1.msra.mxu0 %v134
    %152 = vmatprep.subr.mxu0 0.0
    %153 = vmatpush1.msra.mxu0 %v135
    %154 = vmatprep.subr.mxu0 0.0
    %155 = vmatpush1.msra.mxu0 0.0
    %156 = vmatprep.subr.mxu0 0.0
    %157 = vmatpush1.msra.mxu0 0.0
    %158 = vmatprep.subr.mxu0 0.0
    %159 = vmatpush1.msra.mxu0 0.0
    %160 = vmatprep.subr.mxu0 0.0
    %161 = vmatpush1.msra.mxu0 0.0
    %162 = vmatprep.subr.mxu0 0.0
    %163 = vmatpush1.msra.mxu0 0.0
    %164 = vmatprep.subr.mxu0 0.0
    %165 = vmatpush1.msra.mxu0 0.0
    %166 = vmatprep.subr.mxu0 0.0
    %167 = vmatpush1.msra.mxu0 0.0
    %168 = vmatprep.subr.mxu0 0.0
    %169 = vmatpush1.msra.mxu0 0.0
    %170 = vmatprep.subr.mxu0 0.0
    %171 = vmatpush1.msra.mxu0 0.0
    %172 = vmatprep.subr.mxu0 0.0
    %173 = vmatpush1.msra.mxu0 0.0
    %174 = vmatprep.subr.mxu0 0.0
    %175 = vmatpush1.msra.mxu0 0.0
    %176 = vmatprep.subr.mxu0 0.0
    %177 = vmatpush1.msra.mxu0 0.0
    %178 = vmatprep.subr.mxu0 0.0
    %179 = vmatpush1.msra.mxu0 0.0
    %180 = vmatprep.subr.mxu0 0.0
    %181 = vmatpush1.msra.mxu0 0.0
    %182 = vmatprep.subr.mxu0 0.0
    %183 = vmatpush1.msra.mxu0 0.0
    %184 = vmatprep.subr.mxu0 0.0
    %185 = vmatpush1.msra.mxu0 0.0
    %186 = vmatprep.subr.mxu0 0.0
    %187 = vmatpush1.msra.mxu0 0.0
    %188 = vmatprep.subr.mxu0 0.0
    %189 = vmatpush1.msra.mxu0 0.0
    %190 = vmatprep.subr.mxu0 0.0
    %191 = vmatpush1.msra.mxu0 0.0
    %192 = vmatprep.subr.mxu0 0.0
    %193 = vmatpush1.msra.mxu0 0.0
    %194 = vmatprep.subr.mxu0 0.0
    %195 = vmatpush1.msra.mxu0 0.0
    %196 = vmatprep.subr.mxu0 0.0
    %197 = vmatpush1.msra.mxu0 0.0
    %198 = vmatprep.subr.mxu0 0.0
    %199 = vmatpush1.msra.mxu0 0.0
    %200 = vmatprep.subr.mxu0 0.0
    %201 = vmatpush1.msra.mxu0 0.0
    %202 = vmatprep.subr.mxu0 0.0
    %203 = vmatpush1.msra.mxu0 0.0
    %204 = vmatprep.subr.mxu0 0.0
    %205 = vmatpush1.msra.mxu0 0.0
    %206 = vmatprep.subr.mxu0 0.0
    %207 = vmatpush1.msra.mxu0 0.0
    %208 = vmatprep.subr.mxu0 0.0
    %209 = vmatpush1.msra.mxu0 0.0
    %210 = vmatprep.mubr.f32.mxu0 0.0
    %211 = vmatmul.mubr.f32.gmra.mrb[0].mxu0 %v144
    %v212 = vpop.f32.mrb[0].mxu0
    %v213 = vadd.f32 %v141, %v212
    %v214 = vpop.f32.mrb[0].mxu0
    %215 = vdwg.mxu0
    %v216 = vmax.f32 %v213, 0.0
    %v217 = vld [vmem:[%s5] sm:$0x1]
    %v218 = vld [vmem:[%s6] sm:$0x1]
    %vm219 = vcmask 523264
    %v220 = vsel %vm219, %v216, 0.0
    %221 = vadd.xlane.f32.xlu0 %v220
    %v222 = vpop.xlane.xlu0 %221
    %v223 = vrcp.pop 64.0
    %v224 = vmul.f32 %v222, %v223
    %v225 = vmul.f32 %v216, %v216
    %v226 = vsel %vm219, %v225, 0.0
    %227 = vadd.xlane.f32.xlu0 %v226
    %v228 = vpop.xlane.xlu0 %227
    %v229 = vmul.f32 %v228, %v223
    %v230 = vmul.f32 %v224, %v224
    %v231 = vsub.f32 %v229, %v230
    %v232 = vsub.f32 %v216, %v224
    %v233 = vadd.f32 %v231, 1e-05
    %v234 = vrsqrt.pop %v233
    %v235 = vmul.f32 %v232, %v234
    %v237 = vlaneseq
    %v238 = vshrl.u32 %v237, 7
    %v239 = vsub.s32 0, %v238
    %v240 = vrot.slane %v217, %v239
    %v242 = vmul.f32 %v235, %v240
    %v244 = vlaneseq
    %v245 = vshrl.u32 %v244, 7
    %v246 = vsub.s32 0, %v245
    %v247 = vrot.slane %v218, %v246
    %v249 = vadd.f32 %v242, %v247
    %v250 = vld [vmem:[%s7] sm:$0xff]
    %v251 = vld [vmem:[%s7 + $0x8] sm:$0xff]
    %v252 = vld [vmem:[%s7 + $0x10] sm:$0xff]
    %v253 = vld [vmem:[%s7 + $0x18] sm:$0xff]
    %v254 = vld [vmem:[%s7 + $0x20] sm:$0xff]
    %v255 = vld [vmem:[%s7 + $0x28] sm:$0xff]
    %v256 = vld [vmem:[%s7 + $0x30] sm:$0xff]
    %v257 = vld [vmem:[%s7 + $0x38] sm:$0xff]
    %v258 = vld [vmem:[%s8] sm:$0x1]
    %v260 = vlaneseq
    %v261 = vshrl.u32 %v260, 7
    %v262 = vsub.s32 0, %v261
    %v263 = vrot.slane %v258, %v262
    %v266 = vsel %vm219, %v249, 0
    %268 = vmatprep.subr.mxu0 0.0
    %269 = vmatpush1.msra.mxu0 %v250
    %270 = vmatprep.subr.mxu0 0.0
    %271 = vmatpush1.msra.mxu0 %v251
    %272 = vmatprep.subr.mxu0 0.0
    %273 = vmatpush1.msra.mxu0 %v252
    %274 = vmatprep.subr.mxu0 0.0
    %275 = vmatpush1.msra.mxu0 %v253
    %276 = vmatprep.subr.mxu0 0.0
    %277 = vmatpush1.msra.mxu0 %v254
    %278 = vmatprep.subr.mxu0 0.0
    %279 = vmatpush1.msra.mxu0 %v255
    %280 = vmatprep.subr.mxu0 0.0
    %281 = vmatpush1.msra.mxu0 %v256
    %282 = vmatprep.subr.mxu0 0.0
    %283 = vmatpush1.msra.mxu0 %v257
    %284 = vmatprep.subr.mxu0 0.0
    %285 = vmatpush1.msra.mxu0 0.0
    %286 = vmatprep.subr.mxu0 0.0
    %287 = vmatpush1.msra.mxu0 0.0
    %288 = vmatprep.subr.mxu0 0.0
    %289 = vmatpush1.msra.mxu0 0.0
    %290 = vmatprep.subr.mxu0 0.0
    %291 = vmatpush1.msra.mxu0 0.0
    %292 = vmatprep.subr.mxu0 0.0
    %293 = vmatpush1.msra.mxu0 0.0
    %294 = vmatprep.subr.mxu0 0.0
    %295 = vmatpush1.msra.mxu0 0.0
    %296 = vmatprep.subr.mxu0 0.0
    %297 = vmatpush1.msra.mxu0 0.0
    %298 = vmatprep.subr.mxu0 0.0
    %299 = vmatpush1.msra.mxu0 0.0
    %300 = vmatprep.subr.mxu0 0.0
    %301 = vmatpush1.msra.mxu0 0.0
    %302 = vmatprep.subr.mxu0 0.0
    %303 = vmatpush1.msra.mxu0 0.0
    %304 = vmatprep.subr.mxu0 0.0
    %305 = vmatpush1.msra.mxu0 0.0
    %306 = vmatprep.subr.mxu0 0.0
    %307 = vmatpush1.msra.mxu0 0.0
    %308 = vmatprep.subr.mxu0 0.0
    %309 = vmatpush1.msra.mxu0 0.0
    %310 = vmatprep.subr.mxu0 0.0
    %311 = vmatpush1.msra.mxu0 0.0
    %312 = vmatprep.subr.mxu0 0.0
    %313 = vmatpush1.msra.mxu0 0.0
    %314 = vmatprep.subr.mxu0 0.0
    %315 = vmatpush1.msra.mxu0 0.0
    %316 = vmatprep.subr.mxu0 0.0
    %317 = vmatpush1.msra.mxu0 0.0
    %318 = vmatprep.subr.mxu0 0.0
    %319 = vmatpush1.msra.mxu0 0.0
    %320 = vmatprep.subr.mxu0 0.0
    %321 = vmatpush1.msra.mxu0 0.0
    %322 = vmatprep.subr.mxu0 0.0
    %323 = vmatpush1.msra.mxu0 0.0
    %324 = vmatprep.subr.mxu0 0.0
    %325 = vmatpush1.msra.mxu0 0.0
    %326 = vmatprep.subr.mxu0 0.0
    %327 = vmatpush1.msra.mxu0 0.0
    %328 = vmatprep.subr.mxu0 0.0
    %329 = vmatpush1.msra.mxu0 0.0
    %330 = vmatprep.subr.mxu0 0.0
    %331 = vmatpush1.msra.mxu0 0.0
    %332 = vmatprep.mubr.f32.mxu0 0.0
    %333 = vmatmul.mubr.f32.gmra.mrb[0].mxu0 %v266
    %v334 = vpop.f32.mrb[0].mxu0
    %v335 = vadd.f32 %v263, %v334
    %v336 = vpop.f32.mrb[0].mxu0
    %337 = vdwg.mxu0
    %v338 = vmax.f32 %v335, 0.0
    %v339 = vld [vmem:[%s9] sm:$0x1]
    %v340 = vld [vmem:[%s10] sm:$0x1]
    %341 = vadd.xlane.f32.xlu0 %v338
    %v342 = vpop.xlane.xlu0 %341
    %v343 = vrcp.pop 128.0
    %v344 = vmul.f32 %v342, %v343
    %v345 = vmul.f32 %v338, %v338
    %346 = vadd.xlane.f32.xlu0 %v345
    %v347 = vpop.xlane.xlu0 %346
    %v348 = vmul.f32 %v347, %v343
    %v349 = vmul.f32 %v344, %v344
    %v350 = vsub.f32 %v348, %v349
    %v351 = vsub.f32 %v338, %v344
    %v352 = vadd.f32 %v350, 1e-05
    %v353 = vrsqrt.pop %v352
    %v354 = vmul.f32 %v351, %v353
    %v356 = vlaneseq
    %v357 = vshrl.u32 %v356, 7
    %v358 = vsub.s32 0, %v357
    %v359 = vrot.slane %v339, %v358
    %v361 = vmul.f32 %v354, %v359
    %v363 = vlaneseq
    %v364 = vshrl.u32 %v363, 7
    %v365 = vsub.s32 0, %v364
    %v366 = vrot.slane %v340, %v365
    %v368 = vadd.f32 %v361, %v366
    %v369 = vld [vmem:[%s11] sm:$0xff]
    %v370 = vld [vmem:[%s11 + $0x8] sm:$0xff]
    %v371 = vld [vmem:[%s11 + $0x10] sm:$0xff]
    %v372 = vld [vmem:[%s11 + $0x18] sm:$0xff]
    %v373 = vld [vmem:[%s11 + $0x20] sm:$0xff]
    %v374 = vld [vmem:[%s11 + $0x28] sm:$0xff]
    %v375 = vld [vmem:[%s11 + $0x30] sm:$0xff]
    %v376 = vld [vmem:[%s11 + $0x38] sm:$0xff]
    %v377 = vld [vmem:[%s11 + $0x40] sm:$0xff]
    %v378 = vld [vmem:[%s11 + $0x48] sm:$0xff]
    %v379 = vld [vmem:[%s11 + $0x50] sm:$0xff]
    %v380 = vld [vmem:[%s11 + $0x58] sm:$0xff]
    %v381 = vld [vmem:[%s11 + $0x60] sm:$0xff]
    %v382 = vld [vmem:[%s11 + $0x68] sm:$0xff]
    %v383 = vld [vmem:[%s11 + $0x70] sm:$0xff]
    %v384 = vld [vmem:[%s11 + $0x78] sm:$0xff]
    %v385 = vld [vmem:[%s12] sm:$0x1]
    %v387 = vlaneseq
    %v388 = vshrl.u32 %v387, 7
    %v389 = vsub.s32 0, %v388
    %v390 = vrot.slane %v385, %v389
    %392 = vmatprep.subr.mxu0 0.0
    %393 = vmatpush1.msra.mxu0 %v369
    %394 = vmatprep.subr.mxu0 0.0
    %395 = vmatpush1.msra.mxu0 %v370
    %396 = vmatprep.subr.mxu0 0.0
    %397 = vmatpush1.msra.mxu0 %v371
    %398 = vmatprep.subr.mxu0 0.0
    %399 = vmatpush1.msra.mxu0 %v372
    %400 = vmatprep.subr.mxu0 0.0
    %401 = vmatpush1.msra.mxu0 %v373
    %402 = vmatprep.subr.mxu0 0.0
    %403 = vmatpush1.msra.mxu0 %v374
    %404 = vmatprep.subr.mxu0 0.0
    %405 = vmatpush1.msra.mxu0 %v375
    %406 = vmatprep.subr.mxu0 0.0
    %407 = vmatpush1.msra.mxu0 %v376
    %408 = vmatprep.subr.mxu0 0.0
    %409 = vmatpush1.msra.mxu0 %v377
    %410 = vmatprep.subr.mxu0 0.0
    %411 = vmatpush1.msra.mxu0 %v378
    %412 = vmatprep.subr.mxu0 0.0
    %413 = vmatpush1.msra.mxu0 %v379
    %414 = vmatprep.subr.mxu0 0.0
    %415 = vmatpush1.msra.mxu0 %v380
    %416 = vmatprep.subr.mxu0 0.0
    %417 = vmatpush1.msra.mxu0 %v381
    %418 = vmatprep.subr.mxu0 0.0
    %419 = vmatpush1.msra.mxu0 %v382
    %420 = vmatprep.subr.mxu0 0.0
    %421 = vmatpush1.msra.mxu0 %v383
    %422 = vmatprep.subr.mxu0 0.0
    %423 = vmatpush1.msra.mxu0 %v384
    %424 = vmatprep.subr.mxu0 0.0
    %425 = vmatpush1.msra.mxu0 0.0
    %426 = vmatprep.subr.mxu0 0.0
    %427 = vmatpush1.msra.mxu0 0.0
    %428 = vmatprep.subr.mxu0 0.0
    %429 = vmatpush1.msra.mxu0 0.0
    %430 = vmatprep.subr.mxu0 0.0
    %431 = vmatpush1.msra.mxu0 0.0
    %432 = vmatprep.subr.mxu0 0.0
    %433 = vmatpush1.msra.mxu0 0.0
    %434 = vmatprep.subr.mxu0 0.0
    %435 = vmatpush1.msra.mxu0 0.0
    %436 = vmatprep.subr.mxu0 0.0
    %437 = vmatpush1.msra.mxu0 0.0
    %438 = vmatprep.subr.mxu0 0.0
    %439 = vmatpush1.msra.mxu0 0.0
    %440 = vmatprep.subr.mxu0 0.0
    %441 = vmatpush1.msra.mxu0 0.0
    %442 = vmatprep.subr.mxu0 0.0
    %443 = vmatpush1.msra.mxu0 0.0
    %444 = vmatprep.subr.mxu0 0.0
    %445 = vmatpush1.msra.mxu0 0.0
    %446 = vmatprep.subr.mxu0 0.0
    %447 = vmatpush1.msra.mxu0 0.0
    %448 = vmatprep.subr.mxu0 0.0
    %449 = vmatpush1.msra.mxu0 0.0
    %450 = vmatprep.subr.mxu0 0.0
    %451 = vmatpush1.msra.mxu0 0.0
    %452 = vmatprep.subr.mxu0 0.0
    %453 = vmatpush1.msra.mxu0 0.0
    %454 = vmatprep.subr.mxu0 0.0
    %455 = vmatpush1.msra.mxu0 0.0
    %456 = vmatprep.mubr.f32.mxu0 0.0
    %457 = vmatmul.mubr.f32.gmra.mrb[0].mxu0 %v368
    %v458 = vpop.f32.mrb[0].mxu0
    %v459 = vadd.f32 %v390, %v458
    %v460 = vpop.f32.mrb[0].mxu0
    %461 = vdwg.mxu0
    %462 = vst [vmem:[#allocation2] sm:$0xff] %v459
    // Predicated region
    $region54: #{expanding_mlp_head.1} parent=1 // pred_check
      _
    $region55: #{expanding_mlp_head.1} parent=1 // pred_check_branch
      %464 = sbr.rel (0) target = $region57
    $region56: #{expanding_mlp_head.1} parent=1 // pred_region
      %s466 = ssub.s32 128, 128
      %467 = vsyncadd [#allocation3], %s466
      %s469 = sshll.u32 [#allocation2], 4
      %s470 = int_to_ptr.vmem [resolvable:$true] %s469
      %472 = dma.vmem_to_hbm [thread:$0]  %s470, 128, %s13, [#allocation3]
    $region57: #{expanding_mlp_head.1} parent=1 // pred_fallthru
      _
    // Predicated region
    $region58: #{expanding_mlp_head.1} parent=1 // pred_check
      _
    $region59: #{expanding_mlp_head.1} parent=1 // pred_check_branch
      %474 = sbr.rel (0) target = $region61
    $region60: #{expanding_mlp_head.1} parent=1 // pred_region
      %475 = dma.done [#allocation3], 128
    $region61: #{expanding_mlp_head.1} parent=1 // pred_fallthru
      _
    %476 = vsyncpa [#allocation3], 1

</llo_original>
